<compile_context>
chip_gen: v6e
topology: v6e:2x2x1
jax: 0.10.0
libtpu: 0.0.40
codegen_flags: <defaults>
</compile_context>

<pallas_src>
import jax
import jax.numpy as jnp
from jax.experimental import pallas as pl
from jax.experimental.pallas import tpu as pltpu


def fused_residual_block_kernel(x_ref, bw1_ref, bt1_ref, bw2_ref, bt2_ref,
                                out_ref):
    """One image (or lane-packed image pair) per grid step.

    x_ref:    (H, L)      input slab, L = P*W*C, f32
    bw*_ref:  (3*L, L)    ky-concatenated block-banded 3x3 weights, bf16
    bt*_ref:  (1, L)      bias tiled over (P, W), f32
    out_ref:  (H, L)      f32
    """
    H, L = x_ref.shape
    x = x_ref[...]                                    # f32, read exactly once

    row = jax.lax.broadcasted_iota(jnp.int32, (H, L), 0)
    not_top = row > 0                                  # zero wrapped row after roll down
    not_bot = row < H - 1                              # zero wrapped row after roll up

    def conv3x3(v, bw_ref, bt_ref):
        # Vertical halo via XLU rolls (no slicing, no scratch); rows that wrap
        # around are masked to zero == zero padding.
        down = jnp.where(not_top, pltpu.roll(v, shift=1, axis=0), 0.0)      # v[h-1]
        up = jnp.where(not_bot, pltpu.roll(v, shift=H - 1, axis=0), 0.0)    # v[h+1]
        # Lay the three shifted copies side by side in lanes -> one K=3L dot.
        a = jnp.concatenate([down, v, up], axis=1).astype(jnp.bfloat16)
        acc = jnp.dot(a, bw_ref[...], preferred_element_type=jnp.float32)
        return acc + bt_ref[...]                       # bias add in f32

    h = jnp.maximum(conv3x3(x, bw1_ref, bt1_ref), 0.0)  # relu(conv1(x)), f32
    out = conv3x3(h, bw2_ref, bt2_ref) + x               # conv2(h) + residual, f32
    out_ref[...] = out.astype(out_ref.dtype)


def _banded_weights(w_hwio, W, P):
    """(3, 3, Cin, Cout) HWIO -> (3*P*W*Cin, P*W*Cout) bf16 banded matrix.

    Per ky: B[w_in*C + ci, w_out*C + co] = w[ky, kx, ci, co] iff
    w_in == w_out + kx - 1; taps outside [0, W) are dropped (== zero W-pad).
    For P lane-packed images the per-ky matrix is block-diagonal over P.
    The three ky matrices are concatenated along K (rows).
    """
    C = w_hwio.shape[2]
    mats = []
    for ky in range(3):
        b = jnp.zeros((W * C, W * C), w_hwio.dtype)
        for kx in range(3):
            shift = jnp.eye(W, W, k=1 - kx, dtype=w_hwio.dtype)
            b = b + jnp.kron(shift, w_hwio[ky, kx])
        if P > 1:
            b = jnp.kron(jnp.eye(P, dtype=b.dtype), b)   # block-diag over images
        mats.append(b)
    return jnp.concatenate(mats, axis=0).astype(jnp.bfloat16)


def choose_images_per_step(N, W, C):
    """Pack 2 images into lanes only when lanes are < 128 AND the grid still
    has >= 2 steps afterwards (keep both v7x TensorCores busy)."""
    if N % 2 == 0 and N >= 4 and W * C < 128:
        return 2
    return 1


def prepare_params(w1, b1, w2, b2, *, width, images_per_step=1):
    """Hoisted out of the jitted hot path (runs once, like nn.Module init)."""
    P = images_per_step
    bw1 = _banded_weights(w1, width, P)
    bw2 = _banded_weights(w2, width, P)
    bt1 = jnp.tile(b1, P * width).reshape(1, -1).astype(jnp.float32)
    bt2 = jnp.tile(b2, P * width).reshape(1, -1).astype(jnp.float32)
    return bw1, bt1, bw2, bt2


@jax.jit
def residual_block(x_nchw, bw1, bt1, bw2, bt2):
    """Forward pass equivalent to the PyTorch ResidualBlock (NCHW in/out)."""
    N, C, H, W = x_nchw.shape
    L = bw1.shape[1]                 # P * W * C (static at trace time)
    P = L // (W * C)
    assert N % P == 0, "batch must be divisible by images_per_step"

    # NCHW -> (N/P, H, P, W, C) -> (N/P*H, L): one fused transpose, lane-dense.
    x5 = jnp.transpose(x_nchw.reshape(N // P, P, C, H, W), (0, 3, 1, 4, 2))
    x2d = x5.reshape(N // P * H, L)

    out2d = pl.pallas_call(
        fused_residual_block_kernel,
        out_shape=jax.ShapeDtypeStruct((N // P * H, L), x_nchw.dtype),
        grid_spec=pltpu.PrefetchScalarGridSpec(
            num_scalar_prefetch=0,
            grid=(N // P,),          # one image (pair) per step
            in_specs=[
                pl.BlockSpec((H, L), lambda n: (n, 0)),
                pl.BlockSpec((3 * L, L), lambda n: (0, 0)),
                pl.BlockSpec((1, L), lambda n: (0, 0)),
                pl.BlockSpec((3 * L, L), lambda n: (0, 0)),
                pl.BlockSpec((1, L), lambda n: (0, 0)),
            ],
            out_specs=pl.BlockSpec((H, L), lambda n: (n, 0)),
        ),
        compiler_params=pltpu.CompilerParams(
            dimension_semantics=("parallel",)),
    )(x2d, bw1, bt1, bw2, bt2)

    out5 = out2d.reshape(N // P, H, P, W, C)
    out = jnp.transpose(out5, (0, 2, 4, 1, 3)).reshape(N, C, H, W)
    return out


def _reference_block(x_nchw, w1, b1, w2, b2):
    """Pure-JAX f32 (HIGHEST) reference via lax conv."""
    x = jnp.transpose(x_nchw, (0, 2, 3, 1))
    dn = jax.lax.conv_dimension_numbers(x.shape, w1.shape,
                                        ("NHWC", "HWIO", "NHWC"))
    conv = lambda v, w: jax.lax.conv_general_dilated(
        v, w, (1, 1), "SAME", dimension_numbers=dn,
        precision=jax.lax.Precision.HIGHEST)
    h = jnp.maximum(conv(x, w1) + b1, 0.0)
    o = conv(h, w2) + b2 + x
    return jnp.transpose(o, (0, 3, 1, 2))


if __name__ == "__main__":
    N, C, H, W = 2, 4, 16, 16

    key = jax.random.PRNGKey(0)
    kx, k1, kb1, k2, kb2 = jax.random.split(key, 5)

    x = jax.random.normal(kx, (N, C, H, W), dtype=jnp.float32)
    # Synthetic params with shapes from nn.Conv2d(C, C, 3, padding=1), HWIO.
    scale = 1.0 / (C * 9) ** 0.5
    w1 = jax.random.uniform(k1, (3, 3, C, C), jnp.float32, -scale, scale)
    b1 = jax.random.uniform(kb1, (C,), jnp.float32, -scale, scale)
    w2 = jax.random.uniform(k2, (3, 3, C, C), jnp.float32, -scale, scale)
    b2 = jax.random.uniform(kb2, (C,), jnp.float32, -scale, scale)

    # ---- main check: N = 2 -> 1 image per step (both v7x TCs busy) ----------
    P = choose_images_per_step(N, W, C)                       # -> 1
    params = prepare_params(w1, b1, w2, b2, width=W, images_per_step=P)
    out = jax.block_until_ready(residual_block(x, *params))
    ref = jax.block_until_ready(_reference_block(x, w1, b1, w2, b2))
    assert out.shape == (N, C, H, W)
    # bf16 MXU operands (same truncation as default MXU precision) -> loose tol
    # vs the f32 HIGHEST reference.
    assert jnp.allclose(out, ref, atol=2e-2, rtol=2e-2), (
        "mismatch vs reference: max abs err = %e"
        % float(jnp.max(jnp.abs(out - ref))))

    # ---- secondary check: N = 4 -> lane-packed pairs, L = 128 lanes ---------
    N4 = 4
    x4 = jax.random.normal(jax.random.PRNGKey(1), (N4, C, H, W), jnp.float32)
    P4 = choose_images_per_step(N4, W, C)                     # -> 2
    params4 = prepare_params(w1, b1, w2, b2, width=W, images_per_step=P4)
    out4 = jax.block_until_ready(residual_block(x4, *params4))
    ref4 = jax.block_until_ready(_reference_block(x4, w1, b1, w2, b2))
    assert out4.shape == (N4, C, H, W)
    assert jnp.allclose(out4, ref4, atol=2e-2, rtol=2e-2), (
        "lane-packed mismatch: max abs err = %e"
        % float(jnp.max(jnp.abs(out4 - ref4))))

    print("KERNEL_OK")
</pallas_src>

<mosaic_0001>
module attributes {stable_mosaic.version = 11 : i64} {
  func.func @fused_residual_block_kernel(%arg0: i32, %arg1: memref<16x64xf32, #tpu.memory_space<vmem>>, %arg2: memref<192x64xbf16, #tpu.memory_space<vmem>>, %arg3: memref<1x64xf32, #tpu.memory_space<vmem>>, %arg4: memref<192x64xbf16, #tpu.memory_space<vmem>>, %arg5: memref<1x64xf32, #tpu.memory_space<vmem>>, %arg6: memref<16x64xf32, #tpu.memory_space<vmem>>) attributes {dimension_semantics = [#tpu.dimension_semantics<parallel>], iteration_bounds = array<i64: 2>, scalar_prefetch = 0 : i64, scratch_operands = 0 : i64, tpu.core_type = #tpu.core_type<tc>, window_params = [{transform_indices = @transform_0, window_bounds = array<i64: 16, 64>}, {pipeline_mode = #tpu.pipeline_mode<synchronous>, transform_indices = @transform_1, window_bounds = array<i64: 192, 64>}, {pipeline_mode = #tpu.pipeline_mode<synchronous>, transform_indices = @transform_2, window_bounds = array<i64: 1, 64>}, {pipeline_mode = #tpu.pipeline_mode<synchronous>, transform_indices = @transform_3, window_bounds = array<i64: 192, 64>}, {pipeline_mode = #tpu.pipeline_mode<synchronous>, transform_indices = @transform_4, window_bounds = array<i64: 1, 64>}, {transform_indices = @transform_5, window_bounds = array<i64: 16, 64>}]} {
    %c0 = arith.constant 0 : index
    %c0_0 = arith.constant 0 : index
    %0 = vector.load %arg1[%c0, %c0_0] : memref<16x64xf32, #tpu.memory_space<vmem>>, vector<16x64xf32>
    %1 = tpu.iota {dimensions = array<i32: 0>} : vector<16x64xi32>
    %c0_i32 = arith.constant 0 : i32
    %2 = vector.broadcast %c0_i32 : i32 to vector<16x64xi32>
    %3 = arith.cmpi sgt, %1, %2 : vector<16x64xi32>
    %c15_i32 = arith.constant 15 : i32
    %4 = vector.broadcast %c15_i32 : i32 to vector<16x64xi32>
    %5 = arith.cmpi slt, %1, %4 : vector<16x64xi32>
    %c1_i32 = arith.constant 1 : i32
    %6 = tpu.dynamic_rotate %0 by %c1_i32 dim 0 : vector<16x64xf32>, i32 -> vector<16x64xf32>
    %cst = arith.constant 0.000000e+00 : f32
    %7 = vector.broadcast %cst : f32 to vector<16x64xf32>
    %8 = arith.select %3, %6, %7 : vector<16x64xi1>, vector<16x64xf32>
    %c15_i32_1 = arith.constant 15 : i32
    %9 = tpu.dynamic_rotate %0 by %c15_i32_1 dim 0 : vector<16x64xf32>, i32 -> vector<16x64xf32>
    %cst_2 = arith.constant 0.000000e+00 : f32
    %10 = vector.broadcast %cst_2 : f32 to vector<16x64xf32>
    %11 = arith.select %5, %9, %10 : vector<16x64xi1>, vector<16x64xf32>
    %12 = tpu.concatenate %8, %0, %11 in 1 : vector<16x64xf32>, vector<16x64xf32>, vector<16x64xf32> -> vector<16x192xf32>
    %13 = arith.truncf %12 : vector<16x192xf32> to vector<16x192xbf16>
    %c0_3 = arith.constant 0 : index
    %c0_4 = arith.constant 0 : index
    %14 = vector.load %arg2[%c0_3, %c0_4] : memref<192x64xbf16, #tpu.memory_space<vmem>>, vector<192x64xbf16>
    %cst_5 = arith.constant dense<0.000000e+00> : vector<16x64xf32>
    %15 = tpu.matmul %13, %14, %cst_5 {dimension_numbers = #tpu.dot_dimension_numbers<[1], [0], [0], [1], [0, 0, 1, 1], [], []>} : vector<16x192xbf16>, vector<192x64xbf16>, vector<16x64xf32> -> vector<16x64xf32>
    %c0_6 = arith.constant 0 : index
    %c0_7 = arith.constant 0 : index
    %16 = vector.load %arg3[%c0_6, %c0_7] : memref<1x64xf32, #tpu.memory_space<vmem>>, vector<1x64xf32>
    %17 = vector.broadcast %16 : vector<1x64xf32> to vector<16x64xf32>
    %18 = arith.addf %15, %17 : vector<16x64xf32>
    %cst_8 = arith.constant 0.000000e+00 : f32
    %19 = vector.broadcast %cst_8 : f32 to vector<16x64xf32>
    %20 = arith.maximumf %18, %19 : vector<16x64xf32>
    %c1_i32_9 = arith.constant 1 : i32
    %21 = tpu.dynamic_rotate %20 by %c1_i32_9 dim 0 : vector<16x64xf32>, i32 -> vector<16x64xf32>
    %cst_10 = arith.constant 0.000000e+00 : f32
    %22 = vector.broadcast %cst_10 : f32 to vector<16x64xf32>
    %23 = arith.select %3, %21, %22 : vector<16x64xi1>, vector<16x64xf32>
    %c15_i32_11 = arith.constant 15 : i32
    %24 = tpu.dynamic_rotate %20 by %c15_i32_11 dim 0 : vector<16x64xf32>, i32 -> vector<16x64xf32>
    %cst_12 = arith.constant 0.000000e+00 : f32
    %25 = vector.broadcast %cst_12 : f32 to vector<16x64xf32>
    %26 = arith.select %5, %24, %25 : vector<16x64xi1>, vector<16x64xf32>
    %27 = tpu.concatenate %23, %20, %26 in 1 : vector<16x64xf32>, vector<16x64xf32>, vector<16x64xf32> -> vector<16x192xf32>
    %28 = arith.truncf %27 : vector<16x192xf32> to vector<16x192xbf16>
    %c0_13 = arith.constant 0 : index
    %c0_14 = arith.constant 0 : index
    %29 = vector.load %arg4[%c0_13, %c0_14] : memref<192x64xbf16, #tpu.memory_space<vmem>>, vector<192x64xbf16>
    %cst_15 = arith.constant dense<0.000000e+00> : vector<16x64xf32>
    %30 = tpu.matmul %28, %29, %cst_15 {dimension_numbers = #tpu.dot_dimension_numbers<[1], [0], [0], [1], [0, 0, 1, 1], [], []>} : vector<16x192xbf16>, vector<192x64xbf16>, vector<16x64xf32> -> vector<16x64xf32>
    %c0_16 = arith.constant 0 : index
    %c0_17 = arith.constant 0 : index
    %31 = vector.load %arg5[%c0_16, %c0_17] : memref<1x64xf32, #tpu.memory_space<vmem>>, vector<1x64xf32>
    %32 = vector.broadcast %31 : vector<1x64xf32> to vector<16x64xf32>
    %33 = arith.addf %30, %32 : vector<16x64xf32>
    %34 = arith.addf %33, %0 : vector<16x64xf32>
    %c0_18 = arith.constant 0 : index
    %c0_19 = arith.constant 0 : index
    %35 = vector.load %arg6[%c0_18, %c0_19] : memref<16x64xf32, #tpu.memory_space<vmem>>, vector<16x64xf32>
    tpu.vector_store %arg6[%c0_18, %c0_19], %34 {strides = array<i32>} : memref<16x64xf32, #tpu.memory_space<vmem>>, vector<16x64xf32>,
    return
  }
  func.func @transform_0(%arg0: i32) -> (i32, i32) {
    %c0_i32 = arith.constant 0 : i32
    %c0_i32_0 = arith.constant 0 : i32
    return %arg0, %c0_i32 : i32, i32
  }
  func.func @transform_1(%arg0: i32) -> (i32, i32) {
    %c0_i32 = arith.constant 0 : i32
    %c0_i32_0 = arith.constant 0 : i32
    %c0_i32_1 = arith.constant 0 : i32
    return %c0_i32, %c0_i32_0 : i32, i32
  }
  func.func @transform_2(%arg0: i32) -> (i32, i32) {
    %c0_i32 = arith.constant 0 : i32
    %c0_i32_0 = arith.constant 0 : i32
    %c0_i32_1 = arith.constant 0 : i32
    return %c0_i32, %c0_i32_0 : i32, i32
  }
  func.func @transform_3(%arg0: i32) -> (i32, i32) {
    %c0_i32 = arith.constant 0 : i32
    %c0_i32_0 = arith.constant 0 : i32
    %c0_i32_1 = arith.constant 0 : i32
    return %c0_i32, %c0_i32_0 : i32, i32
  }
  func.func @transform_4(%arg0: i32) -> (i32, i32) {
    %c0_i32 = arith.constant 0 : i32
    %c0_i32_0 = arith.constant 0 : i32
    %c0_i32_1 = arith.constant 0 : i32
    return %c0_i32, %c0_i32_0 : i32, i32
  }
  func.func @transform_5(%arg0: i32) -> (i32, i32) {
    %c0_i32 = arith.constant 0 : i32
    %c0_i32_0 = arith.constant 0 : i32
    return %arg0, %c0_i32 : i32, i32
  }
}

</mosaic_0001>

<llo_original>
// kernel: residual_block.1
$region0: #{residual_block.1}
  #allocation0 [shape = 'u32[]', space=smem, size = 0x4, offset = 0x4, fixed_abs, tag = 'smem constant byte address 0x4 - core index']
  #allocation1 [shape = 'u32[144,128]{1,0:T(1,128)}', space=vmem, size = 0x12000, scoped, tag = 'internal scratch']
  %s0 = inlined_call_operand.vmem [shape: f32[32,64], index: 0, kind: input, shape index: {}]
  %s1 = inlined_call_operand.vmem [shape: bf16[192,64], index: 1, kind: input, shape index: {}]
  %s2 = inlined_call_operand.vmem [shape: f32[1,64], index: 2, kind: input, shape index: {}]
  %s3 = inlined_call_operand.vmem [shape: bf16[192,64], index: 3, kind: input, shape index: {}]
  %s4 = inlined_call_operand.vmem [shape: f32[1,64], index: 4, kind: input, shape index: {}]
  %s5 = inlined_call_operand.vmem [shape: f32[32,64], index: 5, kind: output, shape index: {}]
  %s6 = sld [smem:[#allocation0]]
  $region53: #{residual_block.1} parent=0
    _
  %s8 = ssub.s32 1, %s6
  %s9 = scalar_select 0, %s8, %s6
  loop: start=0, step=1, limit=4
  $region2: #{residual_block.1} parent=0 // loop_pre_header
    _
  $region3: #{residual_block.1} parent=0 // loop_header
    %s11 = sphi 0, %s15
    %p12 = scmp.ge.s32.totalorder %s11, 4
    %s21 = sphi 0, %s23
    %s24 = sphi 0, %s21
    %s25 = sphi 0, %s24
    %s41 = sphi 0, %s25
    %s45 = sphi 0, %s45
    %s47 = sphi 0, %s45
    %s48 = sphi 0, %s47
    %s62 = sphi 0, %s48
    %s66 = sphi 0, %s66
    %s68 = sphi 0, %s66
    %s69 = sphi 0, %s68
    %s83 = sphi 0, %s69
    %s87 = sphi 0, %s87
    %s89 = sphi 0, %s87
    %s90 = sphi 0, %s89
    %s104 = sphi 0, %s90
    %s108 = sphi 0, %s108
    %s110 = sphi 0, %s108
    %s111 = sphi 0, %s110
    %s125 = sphi 0, %s111
    %s131 = sphi 0, %s133
    %s134 = sphi 0, %s131
    %s135 = sphi 0, %s134
    %s151 = sphi 0, %s135
  $region4: #{residual_block.1} parent=0 // loop_header_branch
    %14 = sbr.rel (%p12) target = $region8
  $region5: #{residual_block.1} parent=0 // loop_body
    %s16 = ssub.s32 %s11, 1
    %s17 = ssub.s32 %s11, 2
    %s18 = sadd.s32 %s11, 1
    %s19 = ssub.s32 %s11, %s18
    %p20 = scmp.eq.s32.totalorder %s19, 0
    %s22 = sadd.s32 %s21, 1
    %s23 = scalar_select %p20, %s21, %s22
    %p26 = pneg %p20
    %p27 = scmp.eq.s32.totalorder %s11, 1
    %p28 = por %p26, %p27
    %p29 = scmp.ne.s32.totalorder %s21, %s24
    %p30 = scmp.eq.s32.totalorder %s11, 0
    %p31 = por %p29, %p30
    %p32 = scmp.ne.s32.totalorder %s21, %s24
    %p33 = scmp.eq.s32.totalorder %s16, 1
    %p34 = por %p32, %p33
    %p35 = scmp.ne.s32.totalorder %s24, %s25
    %p36 = scmp.eq.s32.totalorder %s16, 0
    %p37 = por %p35, %p36
    %p38 = scmp.ne.s32.totalorder %s24, %s25
    %p39 = scmp.eq.s32.totalorder %s17, 1
    %p40 = por %p38, %p39
    %p42 = scmp.ne.s32.totalorder %s25, %s41
    %p43 = scmp.eq.s32.totalorder %s17, 0
    %p44 = por %p42, %p43
    %s46 = sadd.s32 %s45, 1
    %p49 = scmp.eq.s32.totalorder %s11, 1
    %p50 = scmp.ne.s32.totalorder %s45, %s47
    %p51 = scmp.eq.s32.totalorder %s11, 0
    %p52 = por %p50, %p51
    %p53 = scmp.ne.s32.totalorder %s45, %s47
    %p54 = scmp.eq.s32.totalorder %s16, 1
    %p55 = por %p53, %p54
    %p56 = scmp.ne.s32.totalorder %s47, %s48
    %p57 = scmp.eq.s32.totalorder %s16, 0
    %p58 = por %p56, %p57
    %p59 = scmp.ne.s32.totalorder %s47, %s48
    %p60 = scmp.eq.s32.totalorder %s17, 1
    %p61 = por %p59, %p60
    %p63 = scmp.ne.s32.totalorder %s48, %s62
    %p64 = scmp.eq.s32.totalorder %s17, 0
    %p65 = por %p63, %p64
    %s67 = sadd.s32 %s66, 1
    %p70 = scmp.eq.s32.totalorder %s11, 1
    %p71 = scmp.ne.s32.totalorder %s66, %s68
    %p72 = scmp.eq.s32.totalorder %s11, 0
    %p73 = por %p71, %p72
    %p74 = scmp.ne.s32.totalorder %s66, %s68
    %p75 = scmp.eq.s32.totalorder %s16, 1
    %p76 = por %p74, %p75
    %p77 = scmp.ne.s32.totalorder %s68, %s69
    %p78 = scmp.eq.s32.totalorder %s16, 0
    %p79 = por %p77, %p78
    %p80 = scmp.ne.s32.totalorder %s68, %s69
    %p81 = scmp.eq.s32.totalorder %s17, 1
    %p82 = por %p80, %p81
    %p84 = scmp.ne.s32.totalorder %s69, %s83
    %p85 = scmp.eq.s32.totalorder %s17, 0
    %p86 = por %p84, %p85
    %s88 = sadd.s32 %s87, 1
    %p91 = scmp.eq.s32.totalorder %s11, 1
    %p92 = scmp.ne.s32.totalorder %s87, %s89
    %p93 = scmp.eq.s32.totalorder %s11, 0
    %p94 = por %p92, %p93
    %p95 = scmp.ne.s32.totalorder %s87, %s89
    %p96 = scmp.eq.s32.totalorder %s16, 1
    %p97 = por %p95, %p96
    %p98 = scmp.ne.s32.totalorder %s89, %s90
    %p99 = scmp.eq.s32.totalorder %s16, 0
    %p100 = por %p98, %p99
    %p101 = scmp.ne.s32.totalorder %s89, %s90
    %p102 = scmp.eq.s32.totalorder %s17, 1
    %p103 = por %p101, %p102
    %p105 = scmp.ne.s32.totalorder %s90, %s104
    %p106 = scmp.eq.s32.totalorder %s17, 0
    %p107 = por %p105, %p106
    %s109 = sadd.s32 %s108, 1
    %p112 = scmp.eq.s32.totalorder %s11, 1
    %p113 = scmp.ne.s32.totalorder %s108, %s110
    %p114 = scmp.eq.s32.totalorder %s11, 0
    %p115 = por %p113, %p114
    %p116 = scmp.ne.s32.totalorder %s108, %s110
    %p117 = scmp.eq.s32.totalorder %s16, 1
    %p118 = por %p116, %p117
    %p119 = scmp.ne.s32.totalorder %s110, %s111
    %p120 = scmp.eq.s32.totalorder %s16, 0
    %p121 = por %p119, %p120
    %p122 = scmp.ne.s32.totalorder %s110, %s111
    %p123 = scmp.eq.s32.totalorder %s17, 1
    %p124 = por %p122, %p123
    %p126 = scmp.ne.s32.totalorder %s111, %s125
    %p127 = scmp.eq.s32.totalorder %s17, 0
    %p128 = por %p126, %p127
    %s129 = ssub.s32 %s11, %s18
    %p130 = scmp.eq.s32.totalorder %s129, 0
    %s132 = sadd.s32 %s131, 1
    %s133 = scalar_select %p130, %s131, %s132
    %p136 = pneg %p130
    %p137 = scmp.eq.s32.totalorder %s11, 1
    %p138 = por %p136, %p137
    %p139 = scmp.ne.s32.totalorder %s131, %s134
    %p140 = scmp.eq.s32.totalorder %s11, 0
    %p141 = por %p139, %p140
    %p142 = scmp.ne.s32.totalorder %s131, %s134
    %p143 = scmp.eq.s32.totalorder %s16, 1
    %p144 = por %p142, %p143
    %p145 = scmp.ne.s32.totalorder %s134, %s135
    %p146 = scmp.eq.s32.totalorder %s16, 0
    %p147 = por %p145, %p146
    %p148 = scmp.ne.s32.totalorder %s134, %s135
    %p149 = scmp.eq.s32.totalorder %s17, 1
    %p150 = por %p148, %p149
    %p152 = scmp.ne.s32.totalorder %s135, %s151
    %p153 = scmp.eq.s32.totalorder %s17, 0
    %p154 = por %p152, %p153
    %p155 = scmp.le.s32.totalorder 1, %s11
    %p156 = scmp.lt.s32.totalorder %s11, 3
    %p157 = pnand %p155, %p156
    %p158 = pneg %p157
    // Predicated region
    $region9: #{residual_block.1} parent=5 // pred_check
      _
    $region10: #{residual_block.1} parent=5 // pred_check_branch
      %160 = sbr.rel (%p157) target = $region12
    $region11: #{residual_block.1} parent=5 // pred_region
      %s161 = ssub.s32 %s11, 1
      // Predicated region
      $region13: #{residual_block.1} parent=11 // pred_check
        %p162 = pneg %p58
      $region14: #{residual_block.1} parent=11 // pred_check_branch
        %164 = sbr.rel (%p162) target = $region16
      $region15: #{residual_block.1} parent=11 // pred_region
        _
      $region16: #{residual_block.1} parent=11 // pred_fallthru
        _
      // Predicated region
      $region17: #{residual_block.1} parent=11 // pred_check
        %p165 = pneg %p79
      $region18: #{residual_block.1} parent=11 // pred_check_branch
        %167 = sbr.rel (%p165) target = $region20
      $region19: #{residual_block.1} parent=11 // pred_region
        _
      $region20: #{residual_block.1} parent=11 // pred_fallthru
        _
      // Predicated region
      $region21: #{residual_block.1} parent=11 // pred_check
        %p168 = pneg %p100
      $region22: #{residual_block.1} parent=11 // pred_check_branch
        %170 = sbr.rel (%p168) target = $region24
      $region23: #{residual_block.1} parent=11 // pred_region
        _
      $region24: #{residual_block.1} parent=11 // pred_fallthru
        _
      // Predicated region
      $region25: #{residual_block.1} parent=11 // pred_check
        %p171 = pneg %p121
      $region26: #{residual_block.1} parent=11 // pred_check_branch
        %173 = sbr.rel (%p171) target = $region28
      $region27: #{residual_block.1} parent=11 // pred_region
        _
      $region28: #{residual_block.1} parent=11 // pred_fallthru
        _
    $region12: #{residual_block.1} parent=5 // pred_fallthru
      _
    %p174 = scmp.lt.s32.totalorder %s11, 2
    // Predicated region
    $region29: #{residual_block.1} parent=5 // pred_check
      %p175 = pneg %p174
    $region30: #{residual_block.1} parent=5 // pred_check_branch
      %177 = sbr.rel (%p175) target = $region32
    $region31: #{residual_block.1} parent=5 // pred_region
      // Predicated region
      $region33: #{residual_block.1} parent=31 // pred_check
        %p178 = pneg %p31
      $region34: #{residual_block.1} parent=31 // pred_check_branch
        %180 = sbr.rel (%p178) target = $region36
      $region35: #{residual_block.1} parent=31 // pred_region
        %s181 = smul.u32 2, %s11
        %p182 = scmp.lt.s32.totalorder %s181, 3
        %s183 = scalar_select %p182, %s181, 3
        %s184 = smul.addr %s183, 8
        %s185 = scalar_lea.vmem %s0, %s184
        %s186 = smul.u32 2, %s11
      $region36: #{residual_block.1} parent=31 // pred_fallthru
        _
    $region32: #{residual_block.1} parent=5 // pred_fallthru
      _
    %p187 = scmp.le.s32.totalorder 1, %s11
    %p188 = scmp.lt.s32.totalorder %s11, 3
    %p189 = pnand %p187, %p188
    %p190 = pneg %p189
    // Predicated region
    $region37: #{residual_block.1} parent=5 // pred_check
      _
    $region38: #{residual_block.1} parent=5 // pred_check_branch
      %192 = sbr.rel (%p189) target = $region40
    $region39: #{residual_block.1} parent=5 // pred_region
      %s193 = ssub.s32 %s11, 1
      %s194 = smul.u32 2, %s16
      %p195 = scmp.lt.s32.totalorder %s194, 3
      %s196 = scalar_select %p195, %s194, 3
      %s197 = smul.addr %s196, 8
      %s198 = scalar_lea.vmem %s0, %s197
      %p199 = pneg %p37
      %p200 = pneg %p34
      %p201 = pneg %p58
      %p202 = pneg %p55
      %p203 = pneg %p79
      %p204 = pneg %p76
      %p205 = pneg %p100
      %p206 = pneg %p97
      %p207 = pneg %p121
      %p208 = pneg %p118
      %p209 = pneg %p147
      %p210 = pneg %p144
      %s211 = smul.u32 2, %s16
      %p212 = scmp.lt.s32.totalorder %s211, 3
      %s213 = scalar_select %p212, %s211, 3
      %s214 = smul.addr %s213, 8
      %s215 = scalar_lea.vmem %s5, %s214
      %s216 = smul.u32 2, %s16
      %p217 = scmp.lt.s32.totalorder %s216, 3
      %s218 = scalar_select %p217, %s216, 3
      %s219 = smul.addr %s218, 8
      %s220 = scalar_lea.vmem %s0, %s219
      %s221 = smul.u32 2, %s16
      %s222 = smul.u32 2, %s16
      %p223 = scmp.lt.s32.totalorder %s222, 3
      %s224 = scalar_select %p223, %s222, 3
      %s225 = smul.addr %s224, 8
      %s226 = scalar_lea.vmem %s5, %s225
      %s227 = smul.u32 2, %s16
      %v229 = vld [vmem:[%s220] sm:$0xff]
      %v230 = vld [vmem:[%s220 + $0x8] sm:$0xff]
      %v231 = vlaneseq
      %v232 = vshrl.u32 %v231, 7
      %v233 = vadd.s32 %v232, 8
      %vm234 = vcmp.gt.s32.totalorder %v232, 0
      %vm235 = vcmp.gt.s32.totalorder %v233, 0
      %vm236 = vcmp.lt.s32.totalorder %v232, 15
      %vm237 = vcmp.lt.s32.totalorder %v233, 15
      %v238 = vrot.slane %v229, 7
      %v239 = vrot.slane %v230, 7
      %vm240 = vcmp.lt.s32.totalorder %v232, 1
      %v241 = vsel %vm240, %v238, %v239
      %v242 = vsel %vm240, %v239, %v238
      %v243 = vsel %vm234, %v242, 0.0
      %v244 = vsel %vm235, %v241, 0.0
      %v245 = vrot.slane %v229, 1
      %v246 = vrot.slane %v230, 1
      %vm247 = vcmp.lt.s32.totalorder %v232, 7
      %v248 = vsel %vm247, %v245, %v246
      %v249 = vsel %vm247, %v246, %v245
      %v250 = vsel %vm236, %v248, 0.0
      %v251 = vsel %vm237, %v249, 0.0
      %254 = vrot.lane.b32.xlu0 %v229, 64
      %v255 = vpop.permute.xlu0 %254
      %256 = vrot.lane.b32.xlu0 %v230, 64
      %v257 = vpop.permute.xlu0 %256
      %vm260 = vcmask 523264
      %v261 = vsel %vm260, %v243, %v255
      %v262 = vsel %vm260, %v244, %v257
      %v263 = vpack.c.bf16 %v262, %v261
      %v264 = vpack.c.bf16 %v251, %v250
      %v265 = vld [vmem:[%s1] sm:$0xf]
      %v266 = vld [vmem:[%s1 + $0x4] sm:$0xf]
      %v267 = vld [vmem:[%s1 + $0x8] sm:$0xf]
      %v268 = vld [vmem:[%s1 + $0xc] sm:$0xf]
      %v269 = vld [vmem:[%s1 + $0x10] sm:$0xf]
      %v270 = vld [vmem:[%s1 + $0x14] sm:$0xf]
      %v271 = vld [vmem:[%s1 + $0x18] sm:$0xf]
      %v272 = vld [vmem:[%s1 + $0x1c] sm:$0xf]
      %v273 = vld [vmem:[%s1 + $0x20] sm:$0xf]
      %v274 = vld [vmem:[%s1 + $0x24] sm:$0xf]
      %v275 = vld [vmem:[%s1 + $0x28] sm:$0xf]
      %v276 = vld [vmem:[%s1 + $0x2c] sm:$0xf]
      %v277 = vld [vmem:[%s1 + $0x30] sm:$0xf]
      %v278 = vld [vmem:[%s1 + $0x34] sm:$0xf]
      %v279 = vld [vmem:[%s1 + $0x38] sm:$0xf]
      %v280 = vld [vmem:[%s1 + $0x3c] sm:$0xf]
      %v281 = vld [vmem:[%s1 + $0x40] sm:$0xf]
      %v282 = vld [vmem:[%s1 + $0x44] sm:$0xf]
      %v283 = vld [vmem:[%s1 + $0x48] sm:$0xf]
      %v284 = vld [vmem:[%s1 + $0x4c] sm:$0xf]
      %v285 = vld [vmem:[%s1 + $0x50] sm:$0xf]
      %v286 = vld [vmem:[%s1 + $0x54] sm:$0xf]
      %v287 = vld [vmem:[%s1 + $0x58] sm:$0xf]
      %v288 = vld [vmem:[%s1 + $0x5c] sm:$0xf]
      %v289 = vld [vmem:[%s2] sm:$0x1]
      %v291 = vlaneseq
      %v292 = vshrl.u32 %v291, 7
      %v293 = vsub.s32 0, %v292
      %v294 = vrot.slane %v289, %v293
      %v320 = vunpack.c.l.b16 %v265
      %v321 = vunpack.c.l.b16 %v266
      %v322 = vunpack.c.l.b16 %v267
      %v323 = vunpack.c.l.b16 %v268
      %v324 = vunpack.c.l.b16 %v269
      %v325 = vunpack.c.l.b16 %v270
      %v326 = vunpack.c.l.b16 %v271
      %v327 = vunpack.c.l.b16 %v272
      %v328 = vunpack.c.l.b16 %v273
      %v329 = vunpack.c.l.b16 %v274
      %v330 = vunpack.c.l.b16 %v275
      %v331 = vunpack.c.l.b16 %v276
      %v332 = vunpack.c.l.b16 %v277
      %v333 = vunpack.c.l.b16 %v278
      %v334 = vunpack.c.l.b16 %v279
      %v335 = vunpack.c.l.b16 %v280
      %v336 = vunpack.c.l.b16 %v281
      %v337 = vunpack.c.l.b16 %v282
      %v338 = vunpack.c.l.b16 %v283
      %v339 = vunpack.c.l.b16 %v284
      %v340 = vunpack.c.l.b16 %v285
      %v341 = vunpack.c.l.b16 %v286
      %v342 = vunpack.c.l.b16 %v287
      %v343 = vunpack.c.l.b16 %v288
      %v344 = vpack.c.b16 %v321, %v320
      %v345 = vpack.c.b16 %v323, %v322
      %v346 = vpack.c.b16 %v325, %v324
      %v347 = vpack.c.b16 %v327, %v326
      %v348 = vpack.c.b16 %v329, %v328
      %v349 = vpack.c.b16 %v331, %v330
      %v350 = vpack.c.b16 %v333, %v332
      %v351 = vpack.c.b16 %v335, %v334
      %v352 = vpack.c.b16 %v337, %v336
      %v353 = vpack.c.b16 %v339, %v338
      %v354 = vpack.c.b16 %v341, %v340
      %v355 = vpack.c.b16 %v343, %v342
      %v369 = vsel %vm260, %v264, 0
      %371 = vmatprep.subr.bf16.mxu0 0
      %372 = vmatpush1.bf16.msra.mxu0 %v351
      %373 = vmatprep.subr.bf16.mxu0 0
      %374 = vmatpush1.bf16.msra.mxu0 %v350
      %375 = vmatprep.subr.bf16.mxu0 0
      %376 = vmatpush1.bf16.msra.mxu0 %v349
      %377 = vmatprep.subr.bf16.mxu0 0
      %378 = vmatpush1.bf16.msra.mxu0 %v348
      %379 = vmatprep.subr.bf16.mxu0 0
      %380 = vmatpush1.bf16.msra.mxu0 %v347
      %381 = vmatprep.subr.bf16.mxu0 0
      %382 = vmatpush1.bf16.msra.mxu0 %v346
      %383 = vmatprep.subr.bf16.mxu0 0
      %384 = vmatpush1.bf16.msra.mxu0 %v345
      %385 = vmatprep.subr.bf16.mxu0 0
      %386 = vmatpush1.bf16.msra.mxu0 %v344
      %387 = vmatprep.subr.bf16.mxu0 0
      %388 = vmatpush2.bf16.msra.mxu0 0
      %389 = vmatprep.subr.bf16.mxu0 0
      %390 = vmatpush2.bf16.msra.mxu0 0
      %391 = vmatprep.subr.bf16.mxu0 0
      %392 = vmatpush2.bf16.msra.mxu0 0
      %393 = vmatprep.subr.bf16.mxu0 0
      %394 = vmatpush2.bf16.msra.mxu0 0
      %395 = vmatprep.subr.bf16.mxu0 0
      %396 = vmatpush2.bf16.msra.mxu0 %v355
      %397 = vmatprep.subr.bf16.mxu0 0
      %398 = vmatpush2.bf16.msra.mxu0 %v354
      %399 = vmatprep.subr.bf16.mxu0 0
      %400 = vmatpush2.bf16.msra.mxu0 %v353
      %401 = vmatprep.subr.bf16.mxu0 0
      %402 = vmatpush2.bf16.msra.mxu0 %v352
      %403 = vmatprep.mubr.bf16.mxu0 %v369
      %404 = vmatmul.mubr.bf16.gmra.mxu0 %v263
      %v405 = vpop.f32.mrf.mxu0
      %v406 = vadd.f32 %v294, %v405
      %v407 = vpop.f32.mrf.mxu0
      %v408 = vpop.f32.mrf.mxu0
      %v409 = vadd.f32 %v294, %v408
      %v410 = vpop.f32.mrf.mxu0
      %411 = vdwg.mxu0
      %v412 = vmax.f32 %v406, 0.0
      %v413 = vmax.f32 %v409, 0.0
      %v414 = vrot.slane %v412, 7
      %v415 = vrot.slane %v413, 7
      %v416 = vsel %vm240, %v414, %v415
      %v417 = vsel %vm240, %v415, %v414
      %v418 = vsel %vm234, %v417, 0.0
      %v419 = vsel %vm235, %v416, 0.0
      %v420 = vrot.slane %v412, 1
      %v421 = vrot.slane %v413, 1
      %v422 = vsel %vm247, %v420, %v421
      %v423 = vsel %vm247, %v421, %v420
      %v424 = vsel %vm236, %v422, 0.0
      %v425 = vsel %vm237, %v423, 0.0
      %428 = vrot.lane.b32.xlu0 %v412, 64
      %v429 = vpop.permute.xlu0 %428
      %430 = vrot.lane.b32.xlu0 %v413, 64
      %v431 = vpop.permute.xlu0 %430
      %v434 = vsel %vm260, %v418, %v429
      %v435 = vsel %vm260, %v419, %v431
      %v436 = vpack.c.bf16 %v435, %v434
      %v437 = vpack.c.bf16 %v425, %v424
      %v438 = vld [vmem:[%s3] sm:$0xf]
      %v439 = vld [vmem:[%s3 + $0x4] sm:$0xf]
      %v440 = vld [vmem:[%s3 + $0x8] sm:$0xf]
      %v441 = vld [vmem:[%s3 + $0xc] sm:$0xf]
      %v442 = vld [vmem:[%s3 + $0x10] sm:$0xf]
      %v443 = vld [vmem:[%s3 + $0x14] sm:$0xf]
      %v444 = vld [vmem:[%s3 + $0x18] sm:$0xf]
      %v445 = vld [vmem:[%s3 + $0x1c] sm:$0xf]
      %v446 = vld [vmem:[%s3 + $0x20] sm:$0xf]
      %v447 = vld [vmem:[%s3 + $0x24] sm:$0xf]
      %v448 = vld [vmem:[%s3 + $0x28] sm:$0xf]
      %v449 = vld [vmem:[%s3 + $0x2c] sm:$0xf]
      %v450 = vld [vmem:[%s3 + $0x30] sm:$0xf]
      %v451 = vld [vmem:[%s3 + $0x34] sm:$0xf]
      %v452 = vld [vmem:[%s3 + $0x38] sm:$0xf]
      %v453 = vld [vmem:[%s3 + $0x3c] sm:$0xf]
      %v454 = vld [vmem:[%s3 + $0x40] sm:$0xf]
      %v455 = vld [vmem:[%s3 + $0x44] sm:$0xf]
      %v456 = vld [vmem:[%s3 + $0x48] sm:$0xf]
      %v457 = vld [vmem:[%s3 + $0x4c] sm:$0xf]
      %v458 = vld [vmem:[%s3 + $0x50] sm:$0xf]
      %v459 = vld [vmem:[%s3 + $0x54] sm:$0xf]
      %v460 = vld [vmem:[%s3 + $0x58] sm:$0xf]
      %v461 = vld [vmem:[%s3 + $0x5c] sm:$0xf]
      %v462 = vld [vmem:[%s4] sm:$0x1]
      %v464 = vlaneseq
      %v465 = vshrl.u32 %v464, 7
      %v466 = vsub.s32 0, %v465
      %v467 = vrot.slane %v462, %v466
      %v493 = vunpack.c.l.b16 %v438
      %v494 = vunpack.c.l.b16 %v439
      %v495 = vunpack.c.l.b16 %v440
      %v496 = vunpack.c.l.b16 %v441
      %v497 = vunpack.c.l.b16 %v442
      %v498 = vunpack.c.l.b16 %v443
      %v499 = vunpack.c.l.b16 %v444
      %v500 = vunpack.c.l.b16 %v445
      %v501 = vunpack.c.l.b16 %v446
      %v502 = vunpack.c.l.b16 %v447
      %v503 = vunpack.c.l.b16 %v448
      %v504 = vunpack.c.l.b16 %v449
      %v505 = vunpack.c.l.b16 %v450
      %v506 = vunpack.c.l.b16 %v451
      %v507 = vunpack.c.l.b16 %v452
      %v508 = vunpack.c.l.b16 %v453
      %v509 = vunpack.c.l.b16 %v454
      %v510 = vunpack.c.l.b16 %v455
      %v511 = vunpack.c.l.b16 %v456
      %v512 = vunpack.c.l.b16 %v457
      %v513 = vunpack.c.l.b16 %v458
      %v514 = vunpack.c.l.b16 %v459
      %v515 = vunpack.c.l.b16 %v460
      %v516 = vunpack.c.l.b16 %v461
      %v517 = vpack.c.b16 %v494, %v493
      %v518 = vpack.c.b16 %v496, %v495
      %v519 = vpack.c.b16 %v498, %v497
      %v520 = vpack.c.b16 %v500, %v499
      %v521 = vpack.c.b16 %v502, %v501
      %v522 = vpack.c.b16 %v504, %v503
      %v523 = vpack.c.b16 %v506, %v505
      %v524 = vpack.c.b16 %v508, %v507
      %v525 = vpack.c.b16 %v510, %v509
      %v526 = vpack.c.b16 %v512, %v511
      %v527 = vpack.c.b16 %v514, %v513
      %v528 = vpack.c.b16 %v516, %v515
      %v542 = vsel %vm260, %v437, 0
      %544 = vmatprep.subr.bf16.mxu0 0
      %545 = vmatpush1.bf16.msra.mxu0 %v524
      %546 = vmatprep.subr.bf16.mxu0 0
      %547 = vmatpush1.bf16.msra.mxu0 %v523
      %548 = vmatprep.subr.bf16.mxu0 0
      %549 = vmatpush1.bf16.msra.mxu0 %v522
      %550 = vmatprep.subr.bf16.mxu0 0
      %551 = vmatpush1.bf16.msra.mxu0 %v521
      %552 = vmatprep.subr.bf16.mxu0 0
      %553 = vmatpush1.bf16.msra.mxu0 %v520
      %554 = vmatprep.subr.bf16.mxu0 0
      %555 = vmatpush1.bf16.msra.mxu0 %v519
      %556 = vmatprep.subr.bf16.mxu0 0
      %557 = vmatpush1.bf16.msra.mxu0 %v518
      %558 = vmatprep.subr.bf16.mxu0 0
      %559 = vmatpush1.bf16.msra.mxu0 %v517
      %560 = vmatprep.subr.bf16.mxu0 0
      %561 = vmatpush2.bf16.msra.mxu0 0
      %562 = vmatprep.subr.bf16.mxu0 0
      %563 = vmatpush2.bf16.msra.mxu0 0
      %564 = vmatprep.subr.bf16.mxu0 0
      %565 = vmatpush2.bf16.msra.mxu0 0
      %566 = vmatprep.subr.bf16.mxu0 0
      %567 = vmatpush2.bf16.msra.mxu0 0
      %568 = vmatprep.subr.bf16.mxu0 0
      %569 = vmatpush2.bf16.msra.mxu0 %v528
      %570 = vmatprep.subr.bf16.mxu0 0
      %571 = vmatpush2.bf16.msra.mxu0 %v527
      %572 = vmatprep.subr.bf16.mxu0 0
      %573 = vmatpush2.bf16.msra.mxu0 %v526
      %574 = vmatprep.subr.bf16.mxu0 0
      %575 = vmatpush2.bf16.msra.mxu0 %v525
      %576 = vmatprep.mubr.bf16.mxu0 %v542
      %577 = vmatmul.mubr.bf16.gmra.mxu0 %v436
      %v578 = vpop.f32.mrf.mxu0
      %v579 = vadd.f32 %v467, %v578
      %v580 = vpop.f32.mrf.mxu0
      %v581 = vpop.f32.mrf.mxu0
      %v582 = vadd.f32 %v467, %v581
      %v583 = vpop.f32.mrf.mxu0
      %584 = vdwg.mxu0
      %v585 = vadd.f32 %v579, %v229
      %v586 = vadd.f32 %v582, %v230
      %587 = vst.msk [vmem:[%s226] sm:$0xff] %vm260, %v585
      %588 = vst.msk [vmem:[%s226 + $0x8] sm:$0xff] %vm260, %v586
      %s589 = smul.u32 2, %s16
      %p590 = scmp.lt.s32.totalorder %s589, 3
      %s591 = scalar_select %p590, %s589, 3
      %s592 = smul.addr %s591, 8
      %s593 = scalar_lea.vmem %s5, %s592
      // Predicated region
      $region41: #{residual_block.1} parent=39 // pred_check
        %p594 = pneg %p144
      $region42: #{residual_block.1} parent=39 // pred_check_branch
        %596 = sbr.rel (%p594) target = $region44
      $region43: #{residual_block.1} parent=39 // pred_region
        %s597 = smul.u32 2, %s16
      $region44: #{residual_block.1} parent=39 // pred_fallthru
        _
    $region40: #{residual_block.1} parent=5 // pred_fallthru
      _
    %p598 = scmp.le.s32.totalorder 2, %s11
    // Predicated region
    $region45: #{residual_block.1} parent=5 // pred_check
      %p599 = pneg %p598
    $region46: #{residual_block.1} parent=5 // pred_check_branch
      %601 = sbr.rel (%p599) target = $region48
    $region47: #{residual_block.1} parent=5 // pred_region
      %s602 = ssub.s32 %s11, 2
      // Predicated region
      $region49: #{residual_block.1} parent=47 // pred_check
        %p603 = pneg %p150
      $region50: #{residual_block.1} parent=47 // pred_check_branch
        %605 = sbr.rel (%p603) target = $region52
      $region51: #{residual_block.1} parent=47 // pred_region
        %s606 = smul.u32 2, %s17
        %p607 = scmp.lt.s32.totalorder %s606, 3
        %s608 = scalar_select %p607, %s606, 3
        %s609 = smul.addr %s608, 8
        %s610 = scalar_lea.vmem %s5, %s609
      $region52: #{residual_block.1} parent=47 // pred_fallthru
        _
    $region48: #{residual_block.1} parent=5 // pred_fallthru
      _
  $region6: #{residual_block.1} parent=0 // loop_footer
    %s15 = sadd.s32 1, %s11
  $region7: #{residual_block.1} parent=0 // loop_footer_branch
    %10 = sbr.rel target = $region3
  $region8: #{residual_block.1} parent=0 // loop_exit
    _

</llo_original>
